<compile_context>
chip_gen: v6e
topology: v6e:2x2x1
jax: 0.10.0
libtpu: 0.0.40
codegen_flags: <defaults>
</compile_context>

<pallas_src>
import functools

import jax
import jax.numpy as jnp
from jax import lax
from jax.experimental import pallas as pl
from jax.experimental.pallas import tpu as pltpu


def _window_sums(x, kernel_size, pad):
    """Stride-1 moving-window sums with edge replication over rows of `x`.

    x: (l, lt) float32 tile already resident in VMEM/vregs.  Returns (l, lt)
    float32 with row i = sum_j x[clamp(i + j - pad, 0, l - 1)].  Shifted views
    come from the resident tile (pltpu.roll -> XLU slot, nearly free), so there
    is no extra HBM traffic and no padded array is materialized anywhere.
    The masks also make this correct when kernel_size exceeds l.
    """
    l, lt = x.shape
    row = lax.broadcasted_iota(jnp.int32, (l, lt), 0)
    first = jnp.broadcast_to(x[0:1, :], (l, lt))        # hoisted out of the loop
    last = jnp.broadcast_to(x[l - 1:l, :], (l, lt))
    acc = None
    # NOTE: unrolled O(k) adds is fine for the small kernel_size series_decomp
    # uses (5/25); a prefix-sum formulation would make it O(1)/row for huge k.
    for j in range(kernel_size):
        off = j - pad
        if off == 0:
            term = x
        else:
            term = pltpu.roll(x, shift=(-off) % l, axis=0)
            if off > 0:
                term = jnp.where(row < l - off, term, last)    # replicate x[l-1]
            else:
                term = jnp.where(row >= -off, term, first)     # replicate x[0]
        acc = term if acc is None else acc + term
    return acc


def _moving_avg_kernel_s1(x_ref, o_ref, *, kernel_size, pad):
    # Hot path (series_decomp in MSDformer always uses stride == 1).
    l = x_ref.shape[0]
    l_out = o_ref.shape[0]
    x = x_ref[...].astype(jnp.float32)                  # single resident load
    out = _window_sums(x, kernel_size, pad) * (1.0 / kernel_size)
    if l_out != l:                                      # even kernel_size: L_out = L - 1
        out = out[0:l_out, :]
    o_ref[...] = out.astype(o_ref.dtype)


def _moving_avg_kernel_strided(x_ref, o_ref, acc_ref, *, kernel_size, stride, pad):
    # Cold path (stride > 1, unused by MSDformer): compute contiguous stride-1
    # window sums, then subsample rows i*stride with one strided VMEM read of
    # the already-reduced data (avoids k strided input loads).
    l_out = o_ref.shape[0]
    x = x_ref[...].astype(jnp.float32)
    acc_ref[...] = _window_sums(x, kernel_size, pad)
    out = acc_ref[pl.ds(0, l_out, stride=stride), :]
    o_ref[...] = (out * (1.0 / kernel_size)).astype(o_ref.dtype)


def _choose_lane_tile(n_lanes, n_rows, itemsize, n_batch_blocks):
    """Lane-block width (last dim of the Pallas blocks)."""
    if n_lanes <= 128:
        return n_lanes                                   # single full-extent block
    # ~2 MiB per input block keeps in/out double-buffers + f32 temporaries well
    # inside every generation's scoped-VMEM budget (raised to 32 MiB below).
    by_vmem = ((2 << 20) // max(1, n_rows * itemsize)) // 128 * 128
    tile = int(max(128, min(512, by_vmem)))
    # Give the parallel grid >= 2 steps so both v7x TensorCores get work.
    if n_batch_blocks == 1:
        half = (n_lanes // 2) // 128 * 128
        if half >= 128:
            tile = min(tile, half)
    # No point exceeding the (128-rounded-up) lane extent.
    return min(tile, ((n_lanes + 127) // 128) * 128)


@functools.partial(jax.jit, static_argnums=(1, 2))
def moving_avg(x, kernel_size, stride):
    """x: (B, L, C) -> (B, L_out, C); matches the PyTorch moving_avg module."""
    B, L, C = x.shape
    pad = (kernel_size - 1) // 2
    L_pad = L + 2 * pad
    L_out = (L_pad - kernel_size) // stride + 1

    lane_tile = _choose_lane_tile(C, L, jnp.dtype(x.dtype).itemsize, B)
    n_lane_blocks = pl.cdiv(C, lane_tile)

    if stride == 1:
        kernel = functools.partial(
            _moving_avg_kernel_s1, kernel_size=kernel_size, pad=pad)
        scratch_shapes = []
    else:
        kernel = functools.partial(
            _moving_avg_kernel_strided, kernel_size=kernel_size,
            stride=stride, pad=pad)
        scratch_shapes = [pltpu.VMEM((L, lane_tile), jnp.float32)]

    return pl.pallas_call(
        kernel,
        out_shape=jax.ShapeDtypeStruct((B, L_out, C), x.dtype),
        grid=(B, n_lane_blocks),
        in_specs=[pl.BlockSpec((None, L, lane_tile), lambda b, i: (b, 0, i))],
        out_specs=pl.BlockSpec((None, L_out, lane_tile), lambda b, i: (b, 0, i)),
        scratch_shapes=scratch_shapes,
        compiler_params=pltpu.CompilerParams(
            dimension_semantics=("parallel", "parallel"),
            vmem_limit_bytes=32 * 1024 * 1024,
        ),
    )(x)


def _moving_avg_ref(x, kernel_size, stride):
    # Pure-JAX reference mirroring the PyTorch module.
    pad = (kernel_size - 1) // 2
    front = jnp.repeat(x[:, 0:1, :], pad, axis=1)
    end = jnp.repeat(x[:, -1:, :], pad, axis=1)
    xp = jnp.concatenate([front, x, end], axis=1)
    L_pad = xp.shape[1]
    L_out = (L_pad - kernel_size) // stride + 1
    windows = jnp.stack(
        [xp[:, j * stride: j * stride + kernel_size, :] for j in range(L_out)],
        axis=1,
    )  # (B, L_out, k, C)
    return windows.mean(axis=2).astype(x.dtype)


if __name__ == "__main__":
    key = jax.random.PRNGKey(0)
    k1, k2, k3 = jax.random.split(key, 3)

    # Case 1: C < 128, odd kernel (the series_decomp hot path; single HBM pass).
    x1 = jax.random.normal(k1, (2, 8, 32), dtype=jnp.float32)
    out1 = jax.block_until_ready(moving_avg(x1, 5, 1))
    ref1 = _moving_avg_ref(x1, 5, 1)
    assert out1.shape == ref1.shape, (out1.shape, ref1.shape)
    assert jnp.allclose(out1, ref1, atol=1e-5, rtol=1e-5), "mismatch (C<128, k=5)"

    # Case 1b: even kernel_size exercises the L_out = L - 1 slice path.
    out1b = jax.block_until_ready(moving_avg(x1, 4, 1))
    ref1b = _moving_avg_ref(x1, 4, 1)
    assert out1b.shape == ref1b.shape, (out1b.shape, ref1b.shape)
    assert jnp.allclose(out1b, ref1b, atol=1e-5, rtol=1e-5), "mismatch (even k)"

    # Case 2: C > 128 with B=1 -> multiple lane blocks (tiled lane axis).
    x2 = jax.random.normal(k2, (1, 16, 512), dtype=jnp.float32)
    out2 = jax.block_until_ready(moving_avg(x2, 7, 1))
    ref2 = _moving_avg_ref(x2, 7, 1)
    assert out2.shape == ref2.shape, (out2.shape, ref2.shape)
    assert jnp.allclose(out2, ref2, atol=1e-5, rtol=1e-5), "mismatch (C>128, k=7)"

    # Case 3: bf16 input with large kernel; kernel accumulates in f32.
    x3 = jax.random.normal(k3, (2, 16, 128), dtype=jnp.float32).astype(jnp.bfloat16)
    out3 = jax.block_until_ready(moving_avg(x3, 25, 1))
    ref3 = _moving_avg_ref(x3.astype(jnp.float32), 25, 1).astype(jnp.bfloat16)
    assert out3.shape == ref3.shape, (out3.shape, ref3.shape)
    assert jnp.allclose(out3.astype(jnp.float32), ref3.astype(jnp.float32),
                        atol=2e-2, rtol=2e-2), "mismatch (bf16, k=25)"

    print("KERNEL_OK")
</pallas_src>

<mosaic_0001>
module attributes {stable_mosaic.version = 11 : i64} {
  func.func @_moving_avg_kernel_s1(%arg0: i32, %arg1: i32, %arg2: memref<1x8x32xf32, #tpu.memory_space<vmem>>, %arg3: memref<1x8x32xf32, #tpu.memory_space<vmem>>) attributes {dimension_semantics = [#tpu.dimension_semantics<parallel>, #tpu.dimension_semantics<parallel>], iteration_bounds = array<i64: 2, 1>, scalar_prefetch = 0 : i64, scratch_operands = 0 : i64, tpu.core_type = #tpu.core_type<tc>, window_params = [{transform_indices = @transform_0, window_bounds = array<i64: 1, 8, 32>}, {transform_indices = @transform_1, window_bounds = array<i64: 1, 8, 32>}]} {
    %c0 = arith.constant 0 : index
    %c0_0 = arith.constant 0 : index
    %c0_1 = arith.constant 0 : index
    %0 = vector.load %arg2[%c0, %c0_0, %c0_1] : memref<1x8x32xf32, #tpu.memory_space<vmem>>, vector<1x8x32xf32>
    %1 = vector.shape_cast %0 : vector<1x8x32xf32> to vector<8x32xf32>
    %2 = tpu.iota {dimensions = array<i32: 0>} : vector<8x32xi32>
    %3 = vector.extract_strided_slice %1 {offsets = [0, 0], sizes = [1, 32], strides = [1, 1]} : vector<8x32xf32> to vector<1x32xf32>
    %4 = vector.shape_cast %3 : vector<1x32xf32> to vector<1x32xf32>
    %5 = vector.broadcast %4 : vector<1x32xf32> to vector<8x32xf32>
    %6 = vector.extract_strided_slice %1 {offsets = [7, 0], sizes = [1, 32], strides = [1, 1]} : vector<8x32xf32> to vector<1x32xf32>
    %7 = vector.shape_cast %6 : vector<1x32xf32> to vector<1x32xf32>
    %8 = vector.broadcast %7 : vector<1x32xf32> to vector<8x32xf32>
    %c2_i32 = arith.constant 2 : i32
    %9 = tpu.dynamic_rotate %1 by %c2_i32 dim 0 : vector<8x32xf32>, i32 -> vector<8x32xf32>
    %c2_i32_2 = arith.constant 2 : i32
    %10 = vector.broadcast %c2_i32_2 : i32 to vector<8x32xi32>
    %11 = arith.cmpi sge, %2, %10 : vector<8x32xi32>
    %12 = arith.select %11, %9, %5 : vector<8x32xi1>, vector<8x32xf32>
    %c1_i32 = arith.constant 1 : i32
    %13 = tpu.dynamic_rotate %1 by %c1_i32 dim 0 : vector<8x32xf32>, i32 -> vector<8x32xf32>
    %c1_i32_3 = arith.constant 1 : i32
    %14 = vector.broadcast %c1_i32_3 : i32 to vector<8x32xi32>
    %15 = arith.cmpi sge, %2, %14 : vector<8x32xi32>
    %16 = arith.select %15, %13, %5 : vector<8x32xi1>, vector<8x32xf32>
    %17 = arith.addf %12, %16 : vector<8x32xf32>
    %18 = arith.addf %17, %1 : vector<8x32xf32>
    %c7_i32 = arith.constant 7 : i32
    %19 = tpu.dynamic_rotate %1 by %c7_i32 dim 0 : vector<8x32xf32>, i32 -> vector<8x32xf32>
    %c7_i32_4 = arith.constant 7 : i32
    %20 = vector.broadcast %c7_i32_4 : i32 to vector<8x32xi32>
    %21 = arith.cmpi slt, %2, %20 : vector<8x32xi32>
    %22 = arith.select %21, %19, %8 : vector<8x32xi1>, vector<8x32xf32>
    %23 = arith.addf %18, %22 : vector<8x32xf32>
    %c6_i32 = arith.constant 6 : i32
    %24 = tpu.dynamic_rotate %1 by %c6_i32 dim 0 : vector<8x32xf32>, i32 -> vector<8x32xf32>
    %c6_i32_5 = arith.constant 6 : i32
    %25 = vector.broadcast %c6_i32_5 : i32 to vector<8x32xi32>
    %26 = arith.cmpi slt, %2, %25 : vector<8x32xi32>
    %27 = arith.select %26, %24, %8 : vector<8x32xi1>, vector<8x32xf32>
    %28 = arith.addf %23, %27 : vector<8x32xf32>
    %cst = arith.constant 2.000000e-01 : f32
    %29 = vector.broadcast %cst : f32 to vector<8x32xf32>
    %30 = arith.mulf %28, %29 : vector<8x32xf32>
    %c0_6 = arith.constant 0 : index
    %c0_7 = arith.constant 0 : index
    %c0_8 = arith.constant 0 : index
    %31 = vector.load %arg3[%c0_6, %c0_7, %c0_8] : memref<1x8x32xf32, #tpu.memory_space<vmem>>, vector<1x8x32xf32>
    %32 = vector.shape_cast %31 : vector<1x8x32xf32> to vector<8x32xf32>
    %33 = vector.shape_cast %30 : vector<8x32xf32> to vector<1x8x32xf32>
    tpu.vector_store %arg3[%c0_6, %c0_7, %c0_8], %33 {strides = array<i32>} : memref<1x8x32xf32, #tpu.memory_space<vmem>>, vector<1x8x32xf32>,
    return
  }
  func.func @transform_0(%arg0: i32, %arg1: i32) -> (i32, i32, i32) {
    %c0_i32 = arith.constant 0 : i32
    %c0_i32_0 = arith.constant 0 : i32
    return %arg0, %c0_i32, %arg1 : i32, i32, i32
  }
  func.func @transform_1(%arg0: i32, %arg1: i32) -> (i32, i32, i32) {
    %c0_i32 = arith.constant 0 : i32
    %c0_i32_0 = arith.constant 0 : i32
    return %arg0, %c0_i32, %arg1 : i32, i32, i32
  }
}

</mosaic_0001>

<llo_original>
// kernel: moving_avg.1
$region0: #{moving_avg.1}
  #allocation0 [shape = 'u32[]', space=smem, size = 0x4, offset = 0x4, fixed_abs, tag = 'smem constant byte address 0x4 - core index']
  #allocation1 [shape = 'u32[144,128]{1,0:T(1,128)}', space=vmem, size = 0x12000, scoped, tag = 'internal scratch']
  %s0 = inlined_call_operand.hbm [shape: f32[2,8,32], index: 0, kind: input, shape index: {}]
  %s1 = inlined_call_operand.hbm [shape: f32[2,8,32], index: 1, kind: output, shape index: {}]
  %s2 = sld [smem:[#allocation0]]
  $region41: #{moving_avg.1} parent=0
    _
  %s4 = ssub.s32 1, %s2
  %s5 = scalar_select 0, %s4, %s2
  $region1: #{moving_avg.1} parent=0
    #allocation2 [shape = 'u8[8192]{0}', space=vmem, size = 0x2000, scoped, tag = 'input window, operand 0']
    #allocation3 [shape = 's32[2]{0}', space=sflag, size = 0x8, scoped, tag = 'scoped memory for moving_avg.1']
    #allocation4 [shape = 's32[2]{0}', space=sflag, size = 0x8, scoped, tag = 'scoped memory for moving_avg.1']
    #allocation5 [shape = 'u8[8192]{0}', space=vmem, size = 0x2000, scoped, tag = 'output window, operand 0']
    %6 = vsyncpa [#allocation3], 0
    %s7 = scalar_lea.sflag [#allocation3], 1
    %8 = vsyncpa %s7, 0
    %9 = vsyncpa [#allocation4], 0
    %s10 = scalar_lea.sflag [#allocation4], 1
    %11 = vsyncpa %s10, 0
    loop: start=0, step=1, limit=4
    $region2: #{moving_avg.1} parent=1 // loop_pre_header
      _
    $region3: #{moving_avg.1} parent=1 // loop_header
      %s13 = sphi 0, %s17
      %p14 = scmp.ge.s32.totalorder %s13, 4
      %s20 = sphi 0, %s32
      %s21 = sphi 0, %s28
      %s22 = sphi 0, %s20
      %s23 = sphi 0, %s21
      %s24 = sphi 0, %s22
      %s25 = sphi 0, %s23
      %s37 = sphi 0, %s39
      %s40 = sphi 0, %s37
      %s41 = sphi 0, %s40
      %s57 = sphi 0, %s41
      %s65 = sphi 0, %s67
      %s68 = sphi 0, %s65
      %s69 = sphi 0, %s68
      %s85 = sphi 0, %s69
    $region4: #{moving_avg.1} parent=1 // loop_header_branch
      %16 = sbr.rel (%p14) target = $region8
    $region5: #{moving_avg.1} parent=1 // loop_body
      %s18 = ssub.s32 %s13, 1
      %s19 = ssub.s32 %s13, 2
      %s26 = sadd.s32 1, %s21
      %p27 = scmp.ge.s32.totalorder %s26, 1
      %s28 = scalar_select %p27, 0, %s26
      %s29 = sadd.s32 1, %s20
      %s30 = scalar_select %p27, %s29, %s20
      %p31 = scmp.ge.s32.totalorder %s30, 2
      %s32 = scalar_select %p31, 0, %s30
      %s33 = ssub.s32 %s20, %s32
      %s34 = ssub.s32 %s21, %s28
      %s35 = sor.u32 %s33, %s34
      %p36 = scmp.eq.s32.totalorder %s35, 0
      %s38 = sadd.s32 %s37, 1
      %s39 = scalar_select %p36, %s37, %s38
      %p42 = pneg %p36
      %p43 = scmp.eq.s32.totalorder %s13, 1
      %p44 = por %p42, %p43
      %p45 = scmp.ne.s32.totalorder %s37, %s40
      %p46 = scmp.eq.s32.totalorder %s13, 0
      %p47 = por %p45, %p46
      %p48 = scmp.ne.s32.totalorder %s37, %s40
      %p49 = scmp.eq.s32.totalorder %s18, 1
      %p50 = por %p48, %p49
      %p51 = scmp.ne.s32.totalorder %s40, %s41
      %p52 = scmp.eq.s32.totalorder %s18, 0
      %p53 = por %p51, %p52
      %p54 = scmp.ne.s32.totalorder %s40, %s41
      %p55 = scmp.eq.s32.totalorder %s19, 1
      %p56 = por %p54, %p55
      %p58 = scmp.ne.s32.totalorder %s41, %s57
      %p59 = scmp.eq.s32.totalorder %s19, 0
      %p60 = por %p58, %p59
      %s61 = ssub.s32 %s20, %s32
      %s62 = ssub.s32 %s21, %s28
      %s63 = sor.u32 %s61, %s62
      %p64 = scmp.eq.s32.totalorder %s63, 0
      %s66 = sadd.s32 %s65, 1
      %s67 = scalar_select %p64, %s65, %s66
      %p70 = pneg %p64
      %p71 = scmp.eq.s32.totalorder %s13, 1
      %p72 = por %p70, %p71
      %p73 = scmp.ne.s32.totalorder %s65, %s68
      %p74 = scmp.eq.s32.totalorder %s13, 0
      %p75 = por %p73, %p74
      %p76 = scmp.ne.s32.totalorder %s65, %s68
      %p77 = scmp.eq.s32.totalorder %s18, 1
      %p78 = por %p76, %p77
      %p79 = scmp.ne.s32.totalorder %s68, %s69
      %p80 = scmp.eq.s32.totalorder %s18, 0
      %p81 = por %p79, %p80
      %p82 = scmp.ne.s32.totalorder %s68, %s69
      %p83 = scmp.eq.s32.totalorder %s19, 1
      %p84 = por %p82, %p83
      %p86 = scmp.ne.s32.totalorder %s69, %s85
      %p87 = scmp.eq.s32.totalorder %s19, 0
      %p88 = por %p86, %p87
      %p89 = scmp.le.s32.totalorder 1, %s13
      %p90 = scmp.lt.s32.totalorder %s13, 3
      %p91 = pnand %p89, %p90
      %p92 = pneg %p91
      // Predicated region
      $region9: #{moving_avg.1} parent=5 // pred_check
        _
      $region10: #{moving_avg.1} parent=5 // pred_check_branch
        %94 = sbr.rel (%p91) target = $region12
      $region11: #{moving_avg.1} parent=5 // pred_region
        %s95 = ssub.s32 %s13, 1
      $region12: #{moving_avg.1} parent=5 // pred_fallthru
        _
      %p96 = scmp.lt.s32.totalorder %s13, 2
      // Predicated region
      $region13: #{moving_avg.1} parent=5 // pred_check
        %p97 = pneg %p96
      $region14: #{moving_avg.1} parent=5 // pred_check_branch
        %99 = sbr.rel (%p97) target = $region16
      $region15: #{moving_avg.1} parent=5 // pred_region
        // Predicated region
        $region17: #{moving_avg.1} parent=15 // pred_check
          %p100 = pneg %p47
        $region18: #{moving_avg.1} parent=15 // pred_check_branch
          %102 = sbr.rel (%p100) target = $region20
        $region19: #{moving_avg.1} parent=15 // pred_region
          %s103 = sand.u32 %s37, 1
          %s104 = scalar_lea.sflag [#allocation3], %s103
          %s105 = sand.u32 %s37, 1
          %s106 = smul.addr %s105, 8
          %s107 = scalar_lea.vmem [#allocation2], %s106
          %s109 = ssub.s32 128, 128
          %110 = vsyncadd %s104, %s109
          %s111 = sadd.s32 %s21, %s20
          %s112 = smul.addr %s111, 128
          %s113 = scalar_lea.hbm %s0, %s112
          %s115 = sshll.u32 %s107, 4
          %s116 = int_to_ptr.vmem [resolvable:$true] %s115
          %118 = dma.hbm_to_vmem [thread:$0]  %s113, 128, %s116, %s104
        $region20: #{moving_avg.1} parent=15 // pred_fallthru
          _
      $region16: #{moving_avg.1} parent=5 // pred_fallthru
        _
      %p119 = scmp.le.s32.totalorder 1, %s13
      %p120 = scmp.lt.s32.totalorder %s13, 3
      %p121 = pnand %p119, %p120
      %p122 = pneg %p121
      // Predicated region
      $region21: #{moving_avg.1} parent=5 // pred_check
        _
      $region22: #{moving_avg.1} parent=5 // pred_check_branch
        %124 = sbr.rel (%p121) target = $region24
      $region23: #{moving_avg.1} parent=5 // pred_region
        %s125 = ssub.s32 %s13, 1
        %s126 = sand.u32 %s40, 1
        %s127 = scalar_lea.sflag [#allocation3], %s126
        %s128 = sand.u32 %s40, 1
        %s129 = smul.addr %s128, 8
        %s130 = scalar_lea.vmem [#allocation2], %s129
        // Predicated region
        $region25: #{moving_avg.1} parent=23 // pred_check
          %p131 = pneg %p53
        $region26: #{moving_avg.1} parent=23 // pred_check_branch
          %133 = sbr.rel (%p131) target = $region28
        $region27: #{moving_avg.1} parent=23 // pred_region
          %134 = dma.done %s127, 128
        $region28: #{moving_avg.1} parent=23 // pred_fallthru
          _
        %s135 = sand.u32 %s40, 1
        %s136 = scalar_lea.sflag [#allocation3], %s135
        %s137 = sand.u32 %s40, 1
        %s138 = smul.addr %s137, 8
        %s139 = scalar_lea.vmem [#allocation2], %s138
        %p140 = pneg %p53
        %p141 = pneg %p50
        %p142 = pneg %p81
        %p143 = pneg %p78
        %s144 = sand.u32 %s68, 1
        %s145 = scalar_lea.sflag [#allocation4], %s144
        %s146 = sand.u32 %s68, 1
        %s147 = smul.addr %s146, 8
        %s148 = scalar_lea.vmem [#allocation5], %s147
        %v149 = vld [vmem:[%s130] sm:$0xff]
        %v150 = vlaneseq
        %v151 = vshrl.u32 %v150, 7
        %v152 = vlaneseq
        %v153 = vshrl.u32 %v152, 7
        %v154 = vsub.s32 0, %v153
        %v155 = vrot.slane %v149, %v154
        %v156 = vlaneseq
        %v157 = vshrl.u32 %v156, 7
        %v158 = vsub.s32 7, %v157
        %v159 = vrot.slane %v149, %v158
        %v160 = vrot.slane %v149, 6
        %vm161 = vcmp.ge.s32.totalorder %v151, 2
        %v162 = vsel %vm161, %v160, %v155
        %v163 = vrot.slane %v149, 7
        %vm164 = vcmp.ge.s32.totalorder %v151, 1
        %v165 = vsel %vm164, %v163, %v155
        %v166 = vadd.f32 %v162, %v165
        %v167 = vadd.f32 %v166, %v149
        %v168 = vrot.slane %v149, 1
        %vm169 = vcmp.lt.s32.totalorder %v151, 7
        %v170 = vsel %vm169, %v168, %v159
        %v171 = vadd.f32 %v167, %v170
        %v172 = vrot.slane %v149, 2
        %vm173 = vcmp.lt.s32.totalorder %v151, 6
        %v174 = vsel %vm173, %v172, %v159
        %v175 = vadd.f32 %v171, %v174
        %v176 = vmul.f32 %v175, 0.2
        %vm177 = vcmask 261120
        %178 = vst.msk [vmem:[%s148] sm:$0xff] %vm177, %v176
        %s179 = sand.u32 %s68, 1
        %s180 = scalar_lea.sflag [#allocation4], %s179
        %s181 = sand.u32 %s68, 1
        %s182 = smul.addr %s181, 8
        %s183 = scalar_lea.vmem [#allocation5], %s182
        // Predicated region
        $region29: #{moving_avg.1} parent=23 // pred_check
          %p184 = pneg %p78
        $region30: #{moving_avg.1} parent=23 // pred_check_branch
          %186 = sbr.rel (%p184) target = $region32
        $region31: #{moving_avg.1} parent=23 // pred_region
          %s188 = ssub.s32 128, 128
          %189 = vsyncadd %s180, %s188
          %s190 = sadd.s32 %s23, %s22
          %s191 = smul.addr %s190, 128
          %s192 = scalar_lea.hbm %s1, %s191
          %s194 = sshll.u32 %s183, 4
          %s195 = int_to_ptr.vmem [resolvable:$true] %s194
          %197 = dma.vmem_to_hbm [thread:$0]  %s195, 128, %s192, %s180
        $region32: #{moving_avg.1} parent=23 // pred_fallthru
          _
      $region24: #{moving_avg.1} parent=5 // pred_fallthru
        _
      %p198 = scmp.le.s32.totalorder 2, %s13
      // Predicated region
      $region33: #{moving_avg.1} parent=5 // pred_check
        %p199 = pneg %p198
      $region34: #{moving_avg.1} parent=5 // pred_check_branch
        %201 = sbr.rel (%p199) target = $region36
      $region35: #{moving_avg.1} parent=5 // pred_region
        %s202 = ssub.s32 %s13, 2
        // Predicated region
        $region37: #{moving_avg.1} parent=35 // pred_check
          %p203 = pneg %p84
        $region38: #{moving_avg.1} parent=35 // pred_check_branch
          %205 = sbr.rel (%p203) target = $region40
        $region39: #{moving_avg.1} parent=35 // pred_region
          %s206 = sand.u32 %s69, 1
          %s207 = scalar_lea.sflag [#allocation4], %s206
          %s208 = sand.u32 %s69, 1
          %s209 = smul.addr %s208, 8
          %s210 = scalar_lea.vmem [#allocation5], %s209
          %211 = dma.done %s207, 128
        $region40: #{moving_avg.1} parent=35 // pred_fallthru
          _
      $region36: #{moving_avg.1} parent=5 // pred_fallthru
        _
    $region6: #{moving_avg.1} parent=1 // loop_footer
      %s17 = sadd.s32 1, %s13
    $region7: #{moving_avg.1} parent=1 // loop_footer_branch
      %12 = sbr.rel target = $region3
    $region8: #{moving_avg.1} parent=1 // loop_exit
      _
    %212 = vsyncpa [#allocation3], 1
    %s213 = scalar_lea.sflag [#allocation3], 1
    %214 = vsyncpa %s213, 1
    %215 = vsyncpa [#allocation4], 1
    %s216 = scalar_lea.sflag [#allocation4], 1
    %217 = vsyncpa %s216, 1

</llo_original>
